<compile_context>
chip_gen: v7x
topology: tpu7x:2x2x1
jax: 0.10.0
libtpu: 0.0.40
codegen_flags: <defaults>
</compile_context>

<pallas_src>
import jax
import jax.numpy as jnp
from jax.experimental import pallas as pl
from jax.experimental.pallas import tpu as pltpu


def _round_up(x: int, m: int) -> int:
    return (x + m - 1) // m * m


def _linear_kernel(x_ref, w_ref, b_ref, o_ref):
    # x_ref: (tm, K) bf16, w_ref: (K, N) bf16, b_ref: (1, N) f32, o_ref: (tm, N) out_dtype
    acc = jnp.dot(x_ref[...], w_ref[...], preferred_element_type=jnp.float32)
    o_ref[...] = (acc + b_ref[...]).astype(o_ref.dtype)   # cast to final dtype in-kernel


def _choose_tile_m(M: int, K: int, N: int, in_bytes: int, out_bytes: int,
                   budget_bytes: int = 24 * 1024 * 1024) -> int:
    """Row-tile size from a streaming-VMEM budget (double-buffered input and
    output tiles only; the resident weight is budgeted separately in the
    explicit vmem limit).  Large tiles up to 1024 rows, rounded to 256 when
    possible for MXU/megacore alignment; tiny M gets a single block."""
    kp = _round_up(K, 128)          # lane padding of the VMEM input tile
    np_ = _round_up(N, 128)         # lane padding of the VMEM output tile
    per_row = 2 * (kp * in_bytes + np_ * out_bytes)
    tm = min(1024, max(8, budget_bytes // per_row))
    if tm >= M:
        return _round_up(M, 8)      # single grid step, minimal padding
    if tm >= 256:
        return (tm // 256) * 256
    return max(8, (tm // 8) * 8)


def patch_embedding(x, weight, bias, patch_size, *, compute_dtype=jnp.bfloat16):
    """x: (B, C, H, W); weight: (patch_dim, emb); bias: (emb,).

    Equivalent to:
      Rearrange('b c (h p1) (w p2) -> b (h w) (p1 p2 c)')
      nn.Linear(patch_size*patch_size*in_channels, emb_size)
    Returns (B, num_patches, emb) in x.dtype.
    """
    B, C, H, W = x.shape
    p = patch_size
    h, w = H // p, W // p
    K = p * p * C
    N = weight.shape[1]
    M = B * h * w
    out_dtype = x.dtype

    in_bytes = jnp.dtype(compute_dtype).itemsize
    out_bytes = jnp.dtype(out_dtype).itemsize

    tm = _choose_tile_m(M, K, N, in_bytes, out_bytes)
    grid_m = pl.cdiv(M, tm)
    M_pad = grid_m * tm

    # Rearrange glue: transpose + cast + row-pad kept in one producer chain so
    # at most a single (M_pad, K) bf16 intermediate exists (candidate for
    # input fusion into the pallas_call read).
    xr = x.reshape(B, C, h, p, w, p)
    xr = jnp.transpose(xr, (0, 2, 4, 3, 5, 1))                 # b h w p1 p2 c
    patches = xr.reshape(M, K).astype(compute_dtype)
    if M_pad != M:
        patches = jnp.pad(patches, ((0, M_pad - M), (0, 0)))

    w_c = weight.astype(compute_dtype)                         # (K, N), no N padding
    b_c = bias.astype(jnp.float32).reshape(1, N)               # f32 bias for f32 add

    # Explicit VMEM request from lane-padded footprints; 48 MiB cap leaves
    # headroom on v7x's 64 MiB per-TC VMEM.
    Kp = _round_up(K, 128)
    Np = _round_up(N, 128)
    vmem_est = (2 * tm * Kp * in_bytes          # double-buffered input tiles
                + 2 * tm * Np * out_bytes       # double-buffered output tiles
                + 2 * Kp * Np * in_bytes        # weight (conservatively 2x)
                + 2 * 8 * Np * 4)               # bias
    vmem_limit = int(min(48 << 20, max(16 << 20, vmem_est * 3 // 2)))

    out = pl.pallas_call(
        _linear_kernel,
        out_shape=jax.ShapeDtypeStruct((M_pad, N), out_dtype),
        grid_spec=pltpu.PrefetchScalarGridSpec(
            num_scalar_prefetch=0,
            grid=(grid_m,),
            in_specs=[
                pl.BlockSpec((tm, K), lambda i: (i, 0)),   # streaming patch rows
                pl.BlockSpec((K, N), lambda i: (0, 0)),    # weight, constant map -> resident
                pl.BlockSpec((1, N), lambda i: (0, 0)),    # bias, constant map -> resident
            ],
            out_specs=pl.BlockSpec((tm, N), lambda i: (i, 0)),
        ),
        compiler_params=pltpu.CompilerParams(
            dimension_semantics=("parallel",),             # megacore-shardable on v7x
            vmem_limit_bytes=vmem_limit,
            allow_input_fusion=[True, False, False],       # let XLA fuse the rearrange
        ),
        cost_estimate=pl.CostEstimate(
            flops=2 * M * K * N,
            transcendentals=0,
            bytes_accessed=M * K * in_bytes + K * N * in_bytes + M * N * out_bytes,
        ),
    )(patches, w_c, b_c)

    if M_pad != M:
        out = out[:M]
    return out.reshape(B, h * w, N)


if __name__ == "__main__":
    # Small shapes consistent with the module: in_channels=4, patch_size=4,
    # emb_size=32, image 16x16 -> 16 patches of dim 4*4*4=64 per image.
    B, C, H, W = 2, 4, 16, 16
    patch_size = 4
    emb_size = 32
    patch_dim = patch_size * patch_size * C

    key = jax.random.PRNGKey(0)
    kx, kw, kb = jax.random.split(key, 3)

    x = jax.random.normal(kx, (B, C, H, W), dtype=jnp.float32)

    # Deterministic init mimicking nn.Linear's uniform(-1/sqrt(K), 1/sqrt(K)).
    # (weight stored as (in_features, out_features) so the kernel does x @ W.)
    bound = 1.0 / jnp.sqrt(jnp.float32(patch_dim))
    weight = jax.random.uniform(kw, (patch_dim, emb_size),
                                minval=-bound, maxval=bound, dtype=jnp.float32)
    bias = jax.random.uniform(kb, (emb_size,),
                              minval=-bound, maxval=bound, dtype=jnp.float32)

    out = patch_embedding(x, weight, bias, patch_size)
    out = jax.block_until_ready(out)

    # Pure-JAX references.
    h, w = H // patch_size, W // patch_size
    patches = x.reshape(B, C, h, patch_size, w, patch_size)
    patches = jnp.transpose(patches, (0, 2, 4, 3, 5, 1)).reshape(B, h * w, patch_dim)

    ref_f32 = patches @ weight + bias                               # full f32 reference
    ref_bf16 = (patches.astype(jnp.bfloat16).astype(jnp.float32)    # bf16-input reference
                @ weight.astype(jnp.bfloat16).astype(jnp.float32)) + bias

    assert out.shape == (B, h * w, emb_size), out.shape
    assert out.dtype == x.dtype, out.dtype
    assert jnp.allclose(out, ref_bf16, atol=1e-3, rtol=1e-3), "mismatch vs bf16 reference"
    assert jnp.allclose(out, ref_f32, atol=2e-2, rtol=2e-2), "mismatch vs f32 reference"
    print("KERNEL_OK")
</pallas_src>

<mosaic_0001>
module attributes {stable_mosaic.version = 11 : i64} {
  func.func @_linear_kernel(%arg0: i32, %arg1: memref<32x64xbf16, #tpu.memory_space<vmem>>, %arg2: memref<64x32xbf16, #tpu.memory_space<vmem>>, %arg3: memref<1x32xf32, #tpu.memory_space<vmem>>, %arg4: memref<32x32xf32, #tpu.memory_space<vmem>>) attributes {dimension_semantics = [#tpu.dimension_semantics<parallel>], iteration_bounds = array<i64: 1>, scalar_prefetch = 0 : i64, scratch_operands = 0 : i64, tpu.core_type = #tpu.core_type<tc>, window_params = [{transform_indices = @transform_0, window_bounds = array<i64: 32, 64>}, {pipeline_mode = #tpu.pipeline_mode<synchronous>, transform_indices = @transform_1, window_bounds = array<i64: 64, 32>}, {pipeline_mode = #tpu.pipeline_mode<synchronous>, transform_indices = @transform_2, window_bounds = array<i64: 1, 32>}, {transform_indices = @transform_3, window_bounds = array<i64: 32, 32>}]} {
    %c0 = arith.constant 0 : index
    %c0_0 = arith.constant 0 : index
    %0 = vector.load %arg1[%c0, %c0_0] : memref<32x64xbf16, #tpu.memory_space<vmem>>, vector<32x64xbf16>
    %c0_1 = arith.constant 0 : index
    %c0_2 = arith.constant 0 : index
    %1 = vector.load %arg2[%c0_1, %c0_2] : memref<64x32xbf16, #tpu.memory_space<vmem>>, vector<64x32xbf16>
    %cst = arith.constant dense<0.000000e+00> : vector<32x32xf32>
    %2 = tpu.matmul %0, %1, %cst {dimension_numbers = #tpu.dot_dimension_numbers<[1], [0], [0], [1], [0, 0, 1, 1], [], []>} : vector<32x64xbf16>, vector<64x32xbf16>, vector<32x32xf32> -> vector<32x32xf32>
    %c0_3 = arith.constant 0 : index
    %c0_4 = arith.constant 0 : index
    %3 = vector.load %arg3[%c0_3, %c0_4] : memref<1x32xf32, #tpu.memory_space<vmem>>, vector<1x32xf32>
    %4 = vector.broadcast %3 : vector<1x32xf32> to vector<32x32xf32>
    %5 = arith.addf %2, %4 : vector<32x32xf32>
    %c0_5 = arith.constant 0 : index
    %c0_6 = arith.constant 0 : index
    %6 = vector.load %arg4[%c0_5, %c0_6] : memref<32x32xf32, #tpu.memory_space<vmem>>, vector<32x32xf32>
    tpu.vector_store %arg4[%c0_5, %c0_6], %5 {strides = array<i32>} : memref<32x32xf32, #tpu.memory_space<vmem>>, vector<32x32xf32>,
    return
  }
  func.func @transform_0(%arg0: i32) -> (i32, i32) {
    %c0_i32 = arith.constant 0 : i32
    %c0_i32_0 = arith.constant 0 : i32
    return %arg0, %c0_i32 : i32, i32
  }
  func.func @transform_1(%arg0: i32) -> (i32, i32) {
    %c0_i32 = arith.constant 0 : i32
    %c0_i32_0 = arith.constant 0 : i32
    %c0_i32_1 = arith.constant 0 : i32
    return %c0_i32, %c0_i32_0 : i32, i32
  }
  func.func @transform_2(%arg0: i32) -> (i32, i32) {
    %c0_i32 = arith.constant 0 : i32
    %c0_i32_0 = arith.constant 0 : i32
    %c0_i32_1 = arith.constant 0 : i32
    return %c0_i32, %c0_i32_0 : i32, i32
  }
  func.func @transform_3(%arg0: i32) -> (i32, i32) {
    %c0_i32 = arith.constant 0 : i32
    %c0_i32_0 = arith.constant 0 : i32
    return %arg0, %c0_i32 : i32, i32
  }
}

</mosaic_0001>

<llo_original>
// kernel: tpu_custom_call.1
$region0: #{tpu_custom_call.1}
  #allocation0 [shape = 'u32[]', space=smem, size = 0x4, offset = 0x4, fixed_abs, tag = 'smem constant byte address 0x4 - core index']
  #allocation1 [shape = 'u32[144,128]{1,0:T(1,128)}', space=vmem, size = 0x12000, scoped, tag = 'internal scratch']
  %s0 = inlined_call_operand.vmem [shape: bf16[32,64], index: 0, kind: input, shape index: {}]
  %s1 = inlined_call_operand.vmem [shape: bf16[64,32], index: 1, kind: input, shape index: {}]
  %s2 = inlined_call_operand.vmem [shape: f32[1,32], index: 2, kind: input, shape index: {}]
  %s3 = inlined_call_operand.hbm [shape: f32[32,32], index: 3, kind: output, shape index: {}]
  %s4 = sld [smem:[#allocation0]]
  $region22: #{tpu_custom_call.1} parent=0
    _
  %s6 = ssub.s32 1, %s4
  %s7 = scalar_select 0, %s6, %s4
  $region1: #{tpu_custom_call.1} parent=0
    #allocation2 [shape = 'u8[16384]{0}', space=vmem, size = 0x4000, scoped, tag = 'output window, operand 0, single buffered']
    #allocation3 [shape = 's32[1]{0}', space=sflag, size = 0x4, scoped, tag = 'scoped memory for tpu_custom_call.1']
    %8 = vsyncpa [#allocation3], 0
    // Predicated region
    $region2: #{tpu_custom_call.1} parent=1 // pred_check
      _
    $region3: #{tpu_custom_call.1} parent=1 // pred_check_branch
      %10 = sbr.rel (0) target = $region5
    $region4: #{tpu_custom_call.1} parent=1 // pred_region
      _
    $region5: #{tpu_custom_call.1} parent=1 // pred_fallthru
      _
    // Predicated region
    $region6: #{tpu_custom_call.1} parent=1 // pred_check
      _
    $region7: #{tpu_custom_call.1} parent=1 // pred_check_branch
      %12 = sbr.rel (0) target = $region9
    $region8: #{tpu_custom_call.1} parent=1 // pred_region
      _
    $region9: #{tpu_custom_call.1} parent=1 // pred_fallthru
      _
    // Predicated region
    $region10: #{tpu_custom_call.1} parent=1 // pred_check
      _
    $region11: #{tpu_custom_call.1} parent=1 // pred_check_branch
      %14 = sbr.rel (0) target = $region13
    $region12: #{tpu_custom_call.1} parent=1 // pred_region
      _
    $region13: #{tpu_custom_call.1} parent=1 // pred_fallthru
      _
    %v16 = vld [vmem:[%s0] sm:$0xf]
    %v17 = vld [vmem:[%s0 + $0x4] sm:$0xf]
    %v18 = vld [vmem:[%s0 + $0x8] sm:$0xf]
    %v19 = vld [vmem:[%s0 + $0xc] sm:$0xf]
    %v20 = vld [vmem:[%s1] sm:$0xf]
    %v21 = vld [vmem:[%s1 + $0x4] sm:$0xf]
    %v22 = vld [vmem:[%s1 + $0x8] sm:$0xf]
    %v23 = vld [vmem:[%s1 + $0xc] sm:$0xf]
    %v24 = vld [vmem:[%s1 + $0x10] sm:$0xf]
    %v25 = vld [vmem:[%s1 + $0x14] sm:$0xf]
    %v26 = vld [vmem:[%s1 + $0x18] sm:$0xf]
    %v27 = vld [vmem:[%s1 + $0x1c] sm:$0xf]
    %v28 = vld [vmem:[%s2] sm:$0x1]
    %v30 = vlaneseq
    %v31 = vshrl.u32 %v30, 7
    %v32 = vsub.s32 0, %v31
    %v33 = vrot.slane %v28, %v32
    %v39 = vunpack.c.l.b16 %v16
    %v40 = vunpack.c.l.b16 %v17
    %v41 = vunpack.c.l.b16 %v18
    %v42 = vunpack.c.l.b16 %v19
    %v43 = vpack.c.b16 %v40, %v39
    %v44 = vpack.c.b16 %v42, %v41
    %v53 = vunpack.c.l.b16 %v20
    %v54 = vunpack.c.l.b16 %v21
    %v55 = vunpack.c.l.b16 %v22
    %v56 = vunpack.c.l.b16 %v23
    %v57 = vunpack.c.l.b16 %v24
    %v58 = vunpack.c.l.b16 %v25
    %v59 = vunpack.c.l.b16 %v26
    %v60 = vunpack.c.l.b16 %v27
    %v61 = vpack.c.b16 %v54, %v53
    %v62 = vpack.c.b16 %v56, %v55
    %v63 = vpack.c.b16 %v58, %v57
    %v64 = vpack.c.b16 %v60, %v59
    %vm69 = vcmask 523264
    %v71 = vsel %vm69, %v43, 0
    %v74 = vsel %vm69, %v44, 0
    %76 = vmatprep.subr.bf16.mxu0 0
    %77 = vmatpush1.bf16.msra.mxu0 %v61
    %78 = vmatprep.subr.bf16.mxu0 0
    %79 = vmatpush1.bf16.msra.mxu0 %v62
    %80 = vmatprep.subr.bf16.mxu0 0
    %81 = vmatpush1.bf16.msra.mxu0 %v63
    %82 = vmatprep.subr.bf16.mxu0 0
    %83 = vmatpush1.bf16.msra.mxu0 %v64
    %84 = vmatprep.subr.bf16.mxu0 0
    %85 = vmatpush1.bf16.msra.mxu0 0
    %86 = vmatprep.subr.bf16.mxu0 0
    %87 = vmatpush1.bf16.msra.mxu0 0
    %88 = vmatprep.subr.bf16.mxu0 0
    %89 = vmatpush1.bf16.msra.mxu0 0
    %90 = vmatprep.subr.bf16.mxu0 0
    %91 = vmatpush1.bf16.msra.mxu0 0
    %92 = vmatprep.subr.bf16.mxu0 0
    %93 = vmatpush1.bf16.msra.mxu0 0
    %94 = vmatprep.subr.bf16.mxu0 0
    %95 = vmatpush1.bf16.msra.mxu0 0
    %96 = vmatprep.subr.bf16.mxu0 0
    %97 = vmatpush1.bf16.msra.mxu0 0
    %98 = vmatprep.subr.bf16.mxu0 0
    %99 = vmatpush1.bf16.msra.mxu0 0
    %100 = vmatprep.subr.bf16.mxu0 0
    %101 = vmatpush1.bf16.msra.mxu0 0
    %102 = vmatprep.subr.bf16.mxu0 0
    %103 = vmatpush1.bf16.msra.mxu0 0
    %104 = vmatprep.subr.bf16.mxu0 0
    %105 = vmatpush1.bf16.msra.mxu0 0
    %106 = vmatprep.subr.bf16.mxu0 0
    %107 = vmatpush1.bf16.msra.mxu0 0
    %108 = vmatprep.mubr.bf16.mxu0 0
    %109 = vmatmul.mubr.bf16.gmra.mrb[0].mxu0 %v71
    %v110 = vpop.f32.mrb[0].mxu0
    %v111 = vadd.f32 %v33, %v110
    %v112 = vpop.f32.mrb[0].mxu0
    %v113 = vpop.f32.mrb[0].mxu0
    %v114 = vadd.f32 %v33, %v113
    %v115 = vpop.f32.mrb[0].mxu0
    %116 = vmatprep.mubr.bf16.mxu0 0
    %117 = vmatmul.mubr.bf16.gmra.mrb[0].mxu0 %v74
    %v118 = vpop.f32.mrb[0].mxu0
    %v119 = vadd.f32 %v33, %v118
    %v120 = vpop.f32.mrb[0].mxu0
    %v121 = vpop.f32.mrb[0].mxu0
    %v122 = vadd.f32 %v33, %v121
    %v123 = vpop.f32.mrb[0].mxu0
    %124 = vdwg.mxu0
    %vm125 = vcmask 261120
    %126 = vst.msk [vmem:[#allocation2] sm:$0xff] %vm125, %v111
    %127 = vst.msk [vmem:[#allocation2 + $0x8] sm:$0xff] %vm125, %v114
    %128 = vst.msk [vmem:[#allocation2 + $0x10] sm:$0xff] %vm125, %v119
    %129 = vst.msk [vmem:[#allocation2 + $0x18] sm:$0xff] %vm125, %v122
    // Predicated region
    $region14: #{tpu_custom_call.1} parent=1 // pred_check
      _
    $region15: #{tpu_custom_call.1} parent=1 // pred_check_branch
      %131 = sbr.rel (0) target = $region17
    $region16: #{tpu_custom_call.1} parent=1 // pred_region
      %s133 = ssub.s32 512, 512
      %134 = vsyncadd [#allocation3], %s133
      %s135 = sshll.u32 [#allocation2], 4
      %s136 = int_to_ptr.vmem [resolvable:$true] %s135
      %141 = dma.vmem_to_hbm [thread:$0]  %s136, 512, %s3, [#allocation3], 128, 128, 8
    $region17: #{tpu_custom_call.1} parent=1 // pred_fallthru
      _
    // Predicated region
    $region18: #{tpu_custom_call.1} parent=1 // pred_check
      _
    $region19: #{tpu_custom_call.1} parent=1 // pred_check_branch
      %143 = sbr.rel (0) target = $region21
    $region20: #{tpu_custom_call.1} parent=1 // pred_region
      %144 = dma.done [#allocation3], 512
    $region21: #{tpu_custom_call.1} parent=1 // pred_fallthru
      _
    %145 = vsyncpa [#allocation3], 1

</llo_original>
